<compile_context>
chip_gen: v5e
topology: v5e:2x2
jax: 0.10.0
libtpu: 0.0.40
codegen_flags: <defaults>
</compile_context>

<pallas_src>
import jax
import jax.numpy as jnp
import numpy as np
from jax.experimental import pallas as pl
from jax.experimental.pallas import tpu as pltpu

NEG = float(jnp.finfo(jnp.float32).min) / 2.0  # torch: torch.finfo(Y.dtype).min / 2


def nested_logit_kernel(nest_x_ref, item_x_ref, avail_ref,
                        c_nest_ref, c_item_ref, M_ref, MT_ref,
                        lam_ref, inv_lam_item_ref,
                        out_ref, m_sc):
    K = M_ref.shape[1]

    # ---- utilities via block-diagonal MXU matmuls (trips lane-dense on the RHS) ----
    W = jnp.dot(c_nest_ref[...], nest_x_ref[...],
                preferred_element_type=jnp.float32)                      # (K, Tb)
    Y = jnp.dot(c_item_ref[...], item_x_ref[...],
                preferred_element_type=jnp.float32)                      # (I, Tb)

    # ---- availability: Y[~avail] = finfo.min / 2 (before dividing by lambda) ----
    Y = jnp.where(avail_ref[...] > 0, Y, NEG)

    # ---- Y[:, Bk] /= lambda[k]  (multiply by precomputed reciprocal) ----
    Y = Y * inv_lam_item_ref[...]                                        # (I, Tb)

    M = M_ref[...]                                                       # (I, K) one-hot

    # ---- per-nest max over member items: small unrolled K-loop, no (K,I,Tb) temp ----
    for k in range(K):
        in_nest_k = M[:, k:k + 1] > 0                                    # (I, 1)
        m_sc[k:k + 1, :] = jnp.max(jnp.where(in_nest_k, Y, -jnp.inf),
                                   axis=0, keepdims=True)                # (1, Tb)
    m = m_sc[...]                                                        # (K, Tb)

    # ---- per-nest inclusive value: stable logsumexp over member items ----
    m_item = jnp.dot(M, m, preferred_element_type=jnp.float32)           # (I, Tb)
    e = jnp.exp(Y - m_item)                                              # (I, Tb)
    S = jnp.dot(MT_ref[...], e, preferred_element_type=jnp.float32)      # (K, Tb)
    inclusive = jnp.log(S) + m                                           # (K, Tb)

    # ---- nest-level logit and its logsumexp over nests ----
    nest_logit = W + lam_ref[...] * inclusive                            # (K, Tb)
    nmax = jnp.max(nest_logit, axis=0, keepdims=True)                    # (1, Tb)
    lse = jnp.log(jnp.sum(jnp.exp(nest_logit - nmax),
                          axis=0, keepdims=True)) + nmax                 # (1, Tb)

    # ---- fused output: logP_item + logP_nest = Y + M@(W + (lam-1)*inclusive) - lse ----
    combined = nest_logit - inclusive                                    # (K, Tb)
    out_ref[...] = (Y
                    + jnp.dot(M, combined, preferred_element_type=jnp.float32)
                    - lse)


def _choose_block_t(T, per_trip_bytes, *, vmem_budget_bytes=32 << 20,
                    lane=128, max_block_t=4096):
    """Largest lane-multiple block whose double-buffered per-step slabs fit the VMEM
    budget, capped so the 'parallel' grid keeps >= 2 steps (v7x has two TensorCores)."""
    cap = (vmem_budget_bytes // (2 * per_trip_bytes)) // lane * lane
    cap = max(lane, min(cap, max_block_t))
    if T <= lane:
        return lane
    half = -(-T // 2)                      # ceil(T / 2)
    half = -(-half // lane) * lane         # rounded up to a lane multiple
    return min(cap, half)


def nested_logit_forward(nest_x, item_x, item_availability, nest_coef, item_coef,
                         M, lambdas, *, block_t=None, vmem_budget_bytes=32 << 20):
    """Forward pass of NestedLogitModel (user_index=None path). Returns (T, I) log-probs."""
    T, K, Pn = nest_x.shape
    _, I, Pi = item_x.shape

    # --- tiny constants, built once outside the kernel ---
    C_nest = (jnp.eye(K, dtype=jnp.float32)[:, :, None]
              * jnp.broadcast_to(nest_coef.reshape(1, Pn).astype(jnp.float32),
                                 (K, Pn))[None, :, :]).reshape(K, K * Pn)
    C_item = (jnp.eye(I, dtype=jnp.float32)[:, :, None]
              * item_coef.astype(jnp.float32)[None, :, :]).reshape(I, I * Pi)
    Mf = jnp.asarray(M, jnp.float32)                                  # (I, K)
    MT = Mf.T                                                         # (K, I)
    lam_col = lambdas.reshape(K, 1).astype(jnp.float32)               # (K, 1)
    inv_lam_item = (1.0 / (Mf @ lambdas.astype(jnp.float32))).reshape(I, 1)  # (I, 1)

    # --- lane-dense layout: trips on the 128-lane axis ---
    nest_xT = nest_x.reshape(T, K * Pn).T.astype(jnp.float32)         # (K*Pn, T)
    item_xT = item_x.reshape(T, I * Pi).T.astype(jnp.float32)         # (I*Pi, T)
    availT = item_availability.astype(jnp.float32).T                  # (I, T)

    per_trip_bytes = 4 * (K * Pn + I * Pi + 2 * I)                    # in + avail + out
    if block_t is None:
        block_t = _choose_block_t(T, per_trip_bytes,
                                  vmem_budget_bytes=vmem_budget_bytes)

    # --- pad T up to a multiple of block_t (padded trips: zero features, all available) ---
    Tp = -(-T // block_t) * block_t
    pad = Tp - T
    if pad:
        nest_xT = jnp.pad(nest_xT, ((0, 0), (0, pad)))
        item_xT = jnp.pad(item_xT, ((0, 0), (0, pad)))
        availT = jnp.pad(availT, ((0, 0), (0, pad)), constant_values=1.0)

    grid = (Tp // block_t,)
    outT = pl.pallas_call(
        nested_logit_kernel,
        out_shape=jax.ShapeDtypeStruct((I, Tp), jnp.float32),
        grid_spec=pltpu.PrefetchScalarGridSpec(
            num_scalar_prefetch=0,
            grid=grid,
            in_specs=[
                pl.BlockSpec((K * Pn, block_t), lambda t: (0, t)),    # nest features (T-tiled)
                pl.BlockSpec((I * Pi, block_t), lambda t: (0, t)),    # item features (T-tiled)
                pl.BlockSpec((I, block_t), lambda t: (0, t)),         # availability  (T-tiled)
                pl.BlockSpec((K, K * Pn), lambda t: (0, 0)),          # block-diag nest coef
                pl.BlockSpec((I, I * Pi), lambda t: (0, 0)),          # block-diag item coef
                pl.BlockSpec((I, K), lambda t: (0, 0)),               # M   (item -> nest)
                pl.BlockSpec((K, I), lambda t: (0, 0)),               # M^T
                pl.BlockSpec((K, 1), lambda t: (0, 0)),               # lambdas (per nest)
                pl.BlockSpec((I, 1), lambda t: (0, 0)),               # 1/lambda per item
            ],
            out_specs=pl.BlockSpec((I, block_t), lambda t: (0, t)),
            scratch_shapes=[pltpu.VMEM((K, block_t), jnp.float32)],   # per-nest max rows
        ),
        compiler_params=pltpu.CompilerParams(
            dimension_semantics=("parallel",),
            vmem_limit_bytes=vmem_budget_bytes,
        ),
    )(nest_xT, item_xT, availT, C_nest, C_item, Mf, MT, lam_col, inv_lam_item)

    return outT[:, :T].T                                              # (T, I)


def reference_forward(nest_x, item_x, avail, nest_coef, item_coef, nest_to_item, lambdas):
    """Pure-JAX transcription of NestedLogitModel._forward (for validation)."""
    T, num_items, _ = item_x.shape
    W = jnp.sum(nest_x * nest_coef.reshape(1, 1, -1), axis=-1)            # (T, K)
    Y = jnp.sum(item_x * item_coef[None, :, :], axis=-1)                  # (T, I)
    Y = jnp.where(avail, Y, NEG)
    for k, Bk in nest_to_item.items():
        Y = Y.at[:, jnp.array(Bk)].divide(lambdas[k])
    inclusive = {}
    for k, Bk in nest_to_item.items():
        inclusive[k] = jax.scipy.special.logsumexp(Y[:, jnp.array(Bk)], axis=1)
    Ii = jnp.zeros((T, num_items), jnp.float32)
    for k, Bk in nest_to_item.items():
        Ii = Ii.at[:, jnp.array(Bk)].set(inclusive[k][:, None])
    logP_item = Y - Ii
    logit = jnp.zeros((T, num_items), jnp.float32)
    for k, Bk in nest_to_item.items():
        logit = logit.at[:, jnp.array(Bk)].set(
            (W[:, k] + lambdas[k] * inclusive[k])[:, None])
    cols = jnp.array([v[0] for v in nest_to_item.values()])
    logP_nest = logit - jax.scipy.special.logsumexp(logit[:, cols], axis=1, keepdims=True)
    return logP_item + logP_nest


if __name__ == "__main__":
    # Problem sizes (small, consistent with the module's shapes; T large enough to
    # demonstrate the lane-dense tiling with 2 grid steps).
    nest_to_item = {0: [0, 1, 2], 1: [3, 4], 2: [5, 6, 7]}
    T = 512                # number of trips
    K = len(nest_to_item)  # number of nests
    I = sum(len(v) for v in nest_to_item.values())  # number of items = 8
    Pn, Pi = 4, 5          # number of nest-level / item-level features

    key = jax.random.PRNGKey(0)
    k1, k2, k3, k4 = jax.random.split(key, 4)

    nest_x = jax.random.normal(k1, (T, K, Pn), dtype=jnp.float32)
    item_x = jax.random.normal(k2, (T, I, Pi), dtype=jnp.float32)
    nest_coef = jax.random.normal(k3, (1, Pn), dtype=jnp.float32)   # 'constant' variation
    item_coef = jax.random.normal(k4, (I, Pi), dtype=jnp.float32)   # 'item-full' variation

    # default torch init for shared_lambda=False: ones(num_nests) / 2
    lambdas = jnp.ones((K,), jnp.float32) / 2.0

    # item availability: all available except a few (each nest keeps >= 1 available)
    avail = np.ones((T, I), dtype=bool)
    avail[0, 1] = False
    avail[3, 6] = False
    avail[17, 4] = False
    avail = jnp.asarray(avail)

    # one-hot nest membership matrix (every nest non-empty, every item in exactly one nest)
    M_np = np.zeros((I, K), dtype=np.float32)
    for k, items in nest_to_item.items():
        for i in items:
            M_np[i, k] = 1.0
    M = jnp.asarray(M_np)

    logP = nested_logit_forward(nest_x, item_x, avail, nest_coef, item_coef, M, lambdas)
    logP = jax.block_until_ready(logP)

    logP_ref = reference_forward(nest_x, item_x, avail, nest_coef, item_coef,
                                 nest_to_item, lambdas)
    np.testing.assert_allclose(np.asarray(logP), np.asarray(logP_ref),
                               rtol=1e-4, atol=1e-4)
    print("KERNEL_OK")
</pallas_src>

<mosaic_0001>
module attributes {stable_mosaic.version = 11 : i64} {
  func.func @nested_logit_kernel(%arg0: i32, %arg1: memref<12x256xf32, #tpu.memory_space<vmem>>, %arg2: memref<40x256xf32, #tpu.memory_space<vmem>>, %arg3: memref<8x256xf32, #tpu.memory_space<vmem>>, %arg4: memref<3x12xf32, #tpu.memory_space<vmem>>, %arg5: memref<8x40xf32, #tpu.memory_space<vmem>>, %arg6: memref<8x3xf32, #tpu.memory_space<vmem>>, %arg7: memref<3x8xf32, #tpu.memory_space<vmem>>, %arg8: memref<3x1xf32, #tpu.memory_space<vmem>>, %arg9: memref<8x1xf32, #tpu.memory_space<vmem>>, %arg10: memref<8x256xf32, #tpu.memory_space<vmem>>, %arg11: memref<3x256xf32, #tpu.memory_space<vmem>>) attributes {dimension_semantics = [#tpu.dimension_semantics<parallel>], iteration_bounds = array<i64: 2>, scalar_prefetch = 0 : i64, scratch_operands = 1 : i64, tpu.core_type = #tpu.core_type<tc>, window_params = [{transform_indices = @transform_0, window_bounds = array<i64: 12, 256>}, {transform_indices = @transform_1, window_bounds = array<i64: 40, 256>}, {transform_indices = @transform_2, window_bounds = array<i64: 8, 256>}, {pipeline_mode = #tpu.pipeline_mode<synchronous>, transform_indices = @transform_3, window_bounds = array<i64: 3, 12>}, {pipeline_mode = #tpu.pipeline_mode<synchronous>, transform_indices = @transform_4, window_bounds = array<i64: 8, 40>}, {pipeline_mode = #tpu.pipeline_mode<synchronous>, transform_indices = @transform_5, window_bounds = array<i64: 8, 3>}, {pipeline_mode = #tpu.pipeline_mode<synchronous>, transform_indices = @transform_6, window_bounds = array<i64: 3, 8>}, {pipeline_mode = #tpu.pipeline_mode<synchronous>, transform_indices = @transform_7, window_bounds = array<i64: 3, 1>}, {pipeline_mode = #tpu.pipeline_mode<synchronous>, transform_indices = @transform_8, window_bounds = array<i64: 8, 1>}, {transform_indices = @transform_9, window_bounds = array<i64: 8, 256>}]} {
    %c0 = arith.constant 0 : index
    %c0_0 = arith.constant 0 : index
    %0 = vector.load %arg4[%c0, %c0_0] : memref<3x12xf32, #tpu.memory_space<vmem>>, vector<3x12xf32>
    %c0_1 = arith.constant 0 : index
    %c0_2 = arith.constant 0 : index
    %1 = vector.load %arg1[%c0_1, %c0_2] : memref<12x256xf32, #tpu.memory_space<vmem>>, vector<12x256xf32>
    %cst = arith.constant dense<0.000000e+00> : vector<3x256xf32>
    %2 = tpu.matmul %0, %1, %cst {dimension_numbers = #tpu.dot_dimension_numbers<[1], [0], [0], [1], [0, 0, 1, 1], [], []>} : vector<3x12xf32>, vector<12x256xf32>, vector<3x256xf32> -> vector<3x256xf32>
    %c0_3 = arith.constant 0 : index
    %c0_4 = arith.constant 0 : index
    %3 = vector.load %arg5[%c0_3, %c0_4] : memref<8x40xf32, #tpu.memory_space<vmem>>, vector<8x40xf32>
    %c0_5 = arith.constant 0 : index
    %c0_6 = arith.constant 0 : index
    %4 = vector.load %arg2[%c0_5, %c0_6] : memref<40x256xf32, #tpu.memory_space<vmem>>, vector<40x256xf32>
    %cst_7 = arith.constant dense<0.000000e+00> : vector<8x256xf32>
    %5 = tpu.matmul %3, %4, %cst_7 {dimension_numbers = #tpu.dot_dimension_numbers<[1], [0], [0], [1], [0, 0, 1, 1], [], []>} : vector<8x40xf32>, vector<40x256xf32>, vector<8x256xf32> -> vector<8x256xf32>
    %c0_8 = arith.constant 0 : index
    %c0_9 = arith.constant 0 : index
    %6 = vector.load %arg3[%c0_8, %c0_9] : memref<8x256xf32, #tpu.memory_space<vmem>>, vector<8x256xf32>
    %cst_10 = arith.constant 0.000000e+00 : f32
    %7 = vector.broadcast %cst_10 : f32 to vector<8x256xf32>
    %8 = arith.cmpf ogt, %6, %7 : vector<8x256xf32>
    %cst_11 = arith.constant -1.70141173E+38 : f32
    %9 = vector.broadcast %cst_11 : f32 to vector<8x256xf32>
    %10 = arith.select %8, %5, %9 : vector<8x256xi1>, vector<8x256xf32>
    %c0_12 = arith.constant 0 : index
    %c0_13 = arith.constant 0 : index
    %11 = vector.load %arg9[%c0_12, %c0_13] : memref<8x1xf32, #tpu.memory_space<vmem>>, vector<8x1xf32>
    %12 = vector.broadcast %11 : vector<8x1xf32> to vector<8x256xf32>
    %13 = arith.mulf %10, %12 : vector<8x256xf32>
    %c0_14 = arith.constant 0 : index
    %c0_15 = arith.constant 0 : index
    %14 = vector.load %arg6[%c0_14, %c0_15] : memref<8x3xf32, #tpu.memory_space<vmem>>, vector<8x3xf32>
    %15 = vector.extract_strided_slice %14 {offsets = [0, 0], sizes = [8, 1], strides = [1, 1]} : vector<8x3xf32> to vector<8x1xf32>
    %cst_16 = arith.constant 0.000000e+00 : f32
    %16 = vector.broadcast %cst_16 : f32 to vector<8x1xf32>
    %17 = arith.cmpf ogt, %15, %16 : vector<8x1xf32>
    %cst_17 = arith.constant 0xFF800000 : f32
    %18 = vector.shape_cast %17 : vector<8x1xi1> to vector<8x1xi1>
    %19 = vector.broadcast %18 : vector<8x1xi1> to vector<8x256xi1>
    %20 = vector.broadcast %cst_17 : f32 to vector<8x256xf32>
    %21 = arith.select %19, %13, %20 : vector<8x256xi1>, vector<8x256xf32>
    %cst_18 = arith.constant dense<0xFF800000> : vector<256xf32>
    %22 = vector.multi_reduction <maximumf>, %21, %cst_18 [0] : vector<8x256xf32> to vector<256xf32>
    %23 = vector.shape_cast %22 : vector<256xf32> to vector<1x256xf32>
    %c0_19 = arith.constant 0 : index
    %c0_20 = arith.constant 0 : index
    %24 = vector.load %arg11[%c0_19, %c0_20] : memref<3x256xf32, #tpu.memory_space<vmem>>, vector<1x256xf32>
    tpu.vector_store %arg11[%c0_19, %c0_20], %23 {strides = array<i32>} : memref<3x256xf32, #tpu.memory_space<vmem>>, vector<1x256xf32>,
    %25 = vector.extract_strided_slice %14 {offsets = [0, 1], sizes = [8, 1], strides = [1, 1]} : vector<8x3xf32> to vector<8x1xf32>
    %cst_21 = arith.constant 0.000000e+00 : f32
    %26 = vector.broadcast %cst_21 : f32 to vector<8x1xf32>
    %27 = arith.cmpf ogt, %25, %26 : vector<8x1xf32>
    %cst_22 = arith.constant 0xFF800000 : f32
    %28 = vector.shape_cast %27 : vector<8x1xi1> to vector<8x1xi1>
    %29 = vector.broadcast %28 : vector<8x1xi1> to vector<8x256xi1>
    %30 = vector.broadcast %cst_22 : f32 to vector<8x256xf32>
    %31 = arith.select %29, %13, %30 : vector<8x256xi1>, vector<8x256xf32>
    %cst_23 = arith.constant dense<0xFF800000> : vector<256xf32>
    %32 = vector.multi_reduction <maximumf>, %31, %cst_23 [0] : vector<8x256xf32> to vector<256xf32>
    %33 = vector.shape_cast %32 : vector<256xf32> to vector<1x256xf32>
    %c1 = arith.constant 1 : index
    %c0_24 = arith.constant 0 : index
    %34 = vector.load %arg11[%c1, %c0_24] : memref<3x256xf32, #tpu.memory_space<vmem>>, vector<1x256xf32>
    tpu.vector_store %arg11[%c1, %c0_24], %33 {strides = array<i32>} : memref<3x256xf32, #tpu.memory_space<vmem>>, vector<1x256xf32>,
    %35 = vector.extract_strided_slice %14 {offsets = [0, 2], sizes = [8, 1], strides = [1, 1]} : vector<8x3xf32> to vector<8x1xf32>
    %cst_25 = arith.constant 0.000000e+00 : f32
    %36 = vector.broadcast %cst_25 : f32 to vector<8x1xf32>
    %37 = arith.cmpf ogt, %35, %36 : vector<8x1xf32>
    %cst_26 = arith.constant 0xFF800000 : f32
    %38 = vector.shape_cast %37 : vector<8x1xi1> to vector<8x1xi1>
    %39 = vector.broadcast %38 : vector<8x1xi1> to vector<8x256xi1>
    %40 = vector.broadcast %cst_26 : f32 to vector<8x256xf32>
    %41 = arith.select %39, %13, %40 : vector<8x256xi1>, vector<8x256xf32>
    %cst_27 = arith.constant dense<0xFF800000> : vector<256xf32>
    %42 = vector.multi_reduction <maximumf>, %41, %cst_27 [0] : vector<8x256xf32> to vector<256xf32>
    %43 = vector.shape_cast %42 : vector<256xf32> to vector<1x256xf32>
    %c2 = arith.constant 2 : index
    %c0_28 = arith.constant 0 : index
    %44 = vector.load %arg11[%c2, %c0_28] : memref<3x256xf32, #tpu.memory_space<vmem>>, vector<1x256xf32>
    tpu.vector_store %arg11[%c2, %c0_28], %43 {strides = array<i32>} : memref<3x256xf32, #tpu.memory_space<vmem>>, vector<1x256xf32>,
    %c0_29 = arith.constant 0 : index
    %c0_30 = arith.constant 0 : index
    %45 = vector.load %arg11[%c0_29, %c0_30] : memref<3x256xf32, #tpu.memory_space<vmem>>, vector<3x256xf32>
    %cst_31 = arith.constant dense<0.000000e+00> : vector<8x256xf32>
    %46 = tpu.matmul %14, %45, %cst_31 {dimension_numbers = #tpu.dot_dimension_numbers<[1], [0], [0], [1], [0, 0, 1, 1], [], []>} : vector<8x3xf32>, vector<3x256xf32>, vector<8x256xf32> -> vector<8x256xf32>
    %47 = arith.subf %13, %46 : vector<8x256xf32>
    %48 = math.exp %47 : vector<8x256xf32>
    %c0_32 = arith.constant 0 : index
    %c0_33 = arith.constant 0 : index
    %49 = vector.load %arg7[%c0_32, %c0_33] : memref<3x8xf32, #tpu.memory_space<vmem>>, vector<3x8xf32>
    %cst_34 = arith.constant dense<0.000000e+00> : vector<3x256xf32>
    %50 = tpu.matmul %49, %48, %cst_34 {dimension_numbers = #tpu.dot_dimension_numbers<[1], [0], [0], [1], [0, 0, 1, 1], [], []>} : vector<3x8xf32>, vector<8x256xf32>, vector<3x256xf32> -> vector<3x256xf32>
    %51 = math.log %50 : vector<3x256xf32>
    %52 = arith.addf %51, %45 : vector<3x256xf32>
    %c0_35 = arith.constant 0 : index
    %c0_36 = arith.constant 0 : index
    %53 = vector.load %arg8[%c0_35, %c0_36] : memref<3x1xf32, #tpu.memory_space<vmem>>, vector<3x1xf32>
    %54 = vector.broadcast %53 : vector<3x1xf32> to vector<3x256xf32>
    %55 = arith.mulf %54, %52 : vector<3x256xf32>
    %56 = arith.addf %2, %55 : vector<3x256xf32>
    %cst_37 = arith.constant dense<0xFF800000> : vector<256xf32>
    %57 = vector.multi_reduction <maximumf>, %56, %cst_37 [0] : vector<3x256xf32> to vector<256xf32>
    %58 = vector.shape_cast %57 : vector<256xf32> to vector<1x256xf32>
    %59 = vector.broadcast %58 : vector<1x256xf32> to vector<3x256xf32>
    %60 = arith.subf %56, %59 : vector<3x256xf32>
    %61 = math.exp %60 : vector<3x256xf32>
    %cst_38 = arith.constant dense<0.000000e+00> : vector<256xf32>
    %62 = vector.multi_reduction <add>, %61, %cst_38 [0] : vector<3x256xf32> to vector<256xf32>
    %63 = vector.shape_cast %62 : vector<256xf32> to vector<1x256xf32>
    %64 = math.log %63 : vector<1x256xf32>
    %65 = arith.addf %64, %58 : vector<1x256xf32>
    %66 = arith.subf %56, %52 : vector<3x256xf32>
    %cst_39 = arith.constant dense<0.000000e+00> : vector<8x256xf32>
    %67 = tpu.matmul %14, %66, %cst_39 {dimension_numbers = #tpu.dot_dimension_numbers<[1], [0], [0], [1], [0, 0, 1, 1], [], []>} : vector<8x3xf32>, vector<3x256xf32>, vector<8x256xf32> -> vector<8x256xf32>
    %68 = arith.addf %13, %67 : vector<8x256xf32>
    %69 = vector.broadcast %65 : vector<1x256xf32> to vector<8x256xf32>
    %70 = arith.subf %68, %69 : vector<8x256xf32>
    %c0_40 = arith.constant 0 : index
    %c0_41 = arith.constant 0 : index
    %71 = vector.load %arg10[%c0_40, %c0_41] : memref<8x256xf32, #tpu.memory_space<vmem>>, vector<8x256xf32>
    tpu.vector_store %arg10[%c0_40, %c0_41], %70 {strides = array<i32>} : memref<8x256xf32, #tpu.memory_space<vmem>>, vector<8x256xf32>,
    return
  }
  func.func @transform_0(%arg0: i32) -> (i32, i32) {
    %c0_i32 = arith.constant 0 : i32
    %c0_i32_0 = arith.constant 0 : i32
    return %c0_i32, %arg0 : i32, i32
  }
  func.func @transform_1(%arg0: i32) -> (i32, i32) {
    %c0_i32 = arith.constant 0 : i32
    %c0_i32_0 = arith.constant 0 : i32
    return %c0_i32, %arg0 : i32, i32
  }
  func.func @transform_2(%arg0: i32) -> (i32, i32) {
    %c0_i32 = arith.constant 0 : i32
    %c0_i32_0 = arith.constant 0 : i32
    return %c0_i32, %arg0 : i32, i32
  }
  func.func @transform_3(%arg0: i32) -> (i32, i32) {
    %c0_i32 = arith.constant 0 : i32
    %c0_i32_0 = arith.constant 0 : i32
    %c0_i32_1 = arith.constant 0 : i32
    return %c0_i32, %c0_i32_0 : i32, i32
  }
  func.func @transform_4(%arg0: i32) -> (i32, i32) {
    %c0_i32 = arith.constant 0 : i32
    %c0_i32_0 = arith.constant 0 : i32
    %c0_i32_1 = arith.constant 0 : i32
    return %c0_i32, %c0_i32_0 : i32, i32
  }
  func.func @transform_5(%arg0: i32) -> (i32, i32) {
    %c0_i32 = arith.constant 0 : i32
    %c0_i32_0 = arith.constant 0 : i32
    %c0_i32_1 = arith.constant 0 : i32
    return %c0_i32, %c0_i32_0 : i32, i32
  }
  func.func @transform_6(%arg0: i32) -> (i32, i32) {
    %c0_i32 = arith.constant 0 : i32
    %c0_i32_0 = arith.constant 0 : i32
    %c0_i32_1 = arith.constant 0 : i32
    return %c0_i32, %c0_i32_0 : i32, i32
  }
  func.func @transform_7(%arg0: i32) -> (i32, i32) {
    %c0_i32 = arith.constant 0 : i32
    %c0_i32_0 = arith.constant 0 : i32
    %c0_i32_1 = arith.constant 0 : i32
    return %c0_i32, %c0_i32_0 : i32, i32
  }
  func.func @transform_8(%arg0: i32) -> (i32, i32) {
    %c0_i32 = arith.constant 0 : i32
    %c0_i32_0 = arith.constant 0 : i32
    %c0_i32_1 = arith.constant 0 : i32
    return %c0_i32, %c0_i32_0 : i32, i32
  }
  func.func @transform_9(%arg0: i32) -> (i32, i32) {
    %c0_i32 = arith.constant 0 : i32
    %c0_i32_0 = arith.constant 0 : i32
    return %c0_i32, %arg0 : i32, i32
  }
}

</mosaic_0001>

<llo_original>
// kernel: tpu_custom_call.1
$region0: #{tpu_custom_call.1}
  #allocation0 [shape = 'u32[]', space=smem, size = 0x4, offset = 0x4, fixed_abs, tag = 'smem constant byte address 0x4 - core index']
  #allocation1 [shape = 'u32[72,128]{1,0:T(1,128)}', space=vmem, size = 0x9000, scoped, tag = 'internal scratch']
  #allocation2 [shape = 'f32[3,256]{1,0:T(4,128)}', space=vmem, size = 0x1000, scoped, tag = 'scratch operand']
  %s0 = inlined_call_operand.hbm [shape: f32[12,512], index: 0, kind: input, shape index: {}]
  %s1 = inlined_call_operand.hbm [shape: f32[40,512], index: 1, kind: input, shape index: {}]
  %s2 = inlined_call_operand.hbm [shape: f32[8,512], index: 2, kind: input, shape index: {}]
  %s3 = inlined_call_operand.vmem [shape: f32[3,12], index: 3, kind: input, shape index: {}]
  %s4 = inlined_call_operand.vmem [shape: f32[8,40], index: 4, kind: input, shape index: {}]
  %s5 = inlined_call_operand.vmem [shape: f32[8,3], index: 5, kind: input, shape index: {}]
  %s6 = inlined_call_operand.vmem [shape: f32[3,8], index: 6, kind: input, shape index: {}]
  %s7 = inlined_call_operand.vmem [shape: f32[3,1], index: 7, kind: input, shape index: {}]
  %s8 = inlined_call_operand.vmem [shape: f32[8,1], index: 8, kind: input, shape index: {}]
  %s9 = inlined_call_operand.hbm [shape: f32[8,512], index: 9, kind: output, shape index: {}]
  %s10 = sld [smem:[#allocation0]]
  $region81: #{tpu_custom_call.1} parent=0
    _
  %s12 = ssub.s32 1, %s10
  %s13 = scalar_select 0, %s12, %s10
  $region1: #{tpu_custom_call.1} parent=0
    #allocation3 [shape = 'u8[32768]{0}', space=vmem, size = 0x8000, scoped, tag = 'input window, operand 0']
    #allocation4 [shape = 's32[2]{0}', space=sflag, size = 0x8, scoped, tag = 'scoped memory for tpu_custom_call.1']
    #allocation5 [shape = 's32[2]{0}', space=sflag, size = 0x8, scoped, tag = 'scoped memory for tpu_custom_call.1']
    #allocation6 [shape = 'u8[81920]{0}', space=vmem, size = 0x14000, scoped, tag = 'input window, operand 1']
    #allocation7 [shape = 's32[2]{0}', space=sflag, size = 0x8, scoped, tag = 'scoped memory for tpu_custom_call.1']
    #allocation8 [shape = 'u8[16384]{0}', space=vmem, size = 0x4000, scoped, tag = 'input window, operand 2']
    #allocation9 [shape = 'u8[16384]{0}', space=vmem, size = 0x4000, scoped, tag = 'output window, operand 0']
    %14 = vsyncpa [#allocation4], 0
    %s15 = scalar_lea.sflag [#allocation4], 1
    %16 = vsyncpa %s15, 0
    %17 = vsyncpa [#allocation7], 0
    %s18 = scalar_lea.sflag [#allocation7], 1
    %19 = vsyncpa %s18, 0
    %20 = vsyncpa [#allocation5], 0
    %s21 = scalar_lea.sflag [#allocation5], 1
    %22 = vsyncpa %s21, 0
    loop: start=0, step=1, limit=4
    $region2: #{tpu_custom_call.1} parent=1 // loop_pre_header
      _
    $region3: #{tpu_custom_call.1} parent=1 // loop_header
      %s24 = sphi 0, %s28
      %p25 = scmp.ge.s32.totalorder %s24, 4
      %s34 = sphi 0, %s36
      %s37 = sphi 0, %s34
      %s38 = sphi 0, %s37
      %s54 = sphi 0, %s38
      %s60 = sphi 0, %s62
      %s63 = sphi 0, %s60
      %s64 = sphi 0, %s63
      %s80 = sphi 0, %s64
      %s86 = sphi 0, %s88
      %s89 = sphi 0, %s86
      %s90 = sphi 0, %s89
      %s106 = sphi 0, %s90
      %s110 = sphi 0, %s110
      %s112 = sphi 0, %s110
      %s113 = sphi 0, %s112
      %s127 = sphi 0, %s113
      %s131 = sphi 0, %s131
      %s133 = sphi 0, %s131
      %s134 = sphi 0, %s133
      %s148 = sphi 0, %s134
      %s152 = sphi 0, %s152
      %s154 = sphi 0, %s152
      %s155 = sphi 0, %s154
      %s169 = sphi 0, %s155
      %s173 = sphi 0, %s173
      %s175 = sphi 0, %s173
      %s176 = sphi 0, %s175
      %s190 = sphi 0, %s176
      %s194 = sphi 0, %s194
      %s196 = sphi 0, %s194
      %s197 = sphi 0, %s196
      %s211 = sphi 0, %s197
      %s215 = sphi 0, %s215
      %s217 = sphi 0, %s215
      %s218 = sphi 0, %s217
      %s232 = sphi 0, %s218
      %s238 = sphi 0, %s240
      %s241 = sphi 0, %s238
      %s242 = sphi 0, %s241
      %s258 = sphi 0, %s242
    $region4: #{tpu_custom_call.1} parent=1 // loop_header_branch
      %27 = sbr.rel (%p25) target = $region8
    $region5: #{tpu_custom_call.1} parent=1 // loop_body
      %s29 = ssub.s32 %s24, 1
      %s30 = ssub.s32 %s24, 2
      %s31 = sadd.s32 %s24, 1
      %s32 = ssub.s32 %s24, %s31
      %p33 = scmp.eq.s32.totalorder %s32, 0
      %s35 = sadd.s32 %s34, 1
      %s36 = scalar_select %p33, %s34, %s35
      %p39 = pneg %p33
      %p40 = scmp.eq.s32.totalorder %s24, 1
      %p41 = por %p39, %p40
      %p42 = scmp.ne.s32.totalorder %s34, %s37
      %p43 = scmp.eq.s32.totalorder %s24, 0
      %p44 = por %p42, %p43
      %p45 = scmp.ne.s32.totalorder %s34, %s37
      %p46 = scmp.eq.s32.totalorder %s29, 1
      %p47 = por %p45, %p46
      %p48 = scmp.ne.s32.totalorder %s37, %s38
      %p49 = scmp.eq.s32.totalorder %s29, 0
      %p50 = por %p48, %p49
      %p51 = scmp.ne.s32.totalorder %s37, %s38
      %p52 = scmp.eq.s32.totalorder %s30, 1
      %p53 = por %p51, %p52
      %p55 = scmp.ne.s32.totalorder %s38, %s54
      %p56 = scmp.eq.s32.totalorder %s30, 0
      %p57 = por %p55, %p56
      %s58 = ssub.s32 %s24, %s31
      %p59 = scmp.eq.s32.totalorder %s58, 0
      %s61 = sadd.s32 %s60, 1
      %s62 = scalar_select %p59, %s60, %s61
      %p65 = pneg %p59
      %p66 = scmp.eq.s32.totalorder %s24, 1
      %p67 = por %p65, %p66
      %p68 = scmp.ne.s32.totalorder %s60, %s63
      %p69 = scmp.eq.s32.totalorder %s24, 0
      %p70 = por %p68, %p69
      %p71 = scmp.ne.s32.totalorder %s60, %s63
      %p72 = scmp.eq.s32.totalorder %s29, 1
      %p73 = por %p71, %p72
      %p74 = scmp.ne.s32.totalorder %s63, %s64
      %p75 = scmp.eq.s32.totalorder %s29, 0
      %p76 = por %p74, %p75
      %p77 = scmp.ne.s32.totalorder %s63, %s64
      %p78 = scmp.eq.s32.totalorder %s30, 1
      %p79 = por %p77, %p78
      %p81 = scmp.ne.s32.totalorder %s64, %s80
      %p82 = scmp.eq.s32.totalorder %s30, 0
      %p83 = por %p81, %p82
      %s84 = ssub.s32 %s24, %s31
      %p85 = scmp.eq.s32.totalorder %s84, 0
      %s87 = sadd.s32 %s86, 1
      %s88 = scalar_select %p85, %s86, %s87
      %p91 = pneg %p85
      %p92 = scmp.eq.s32.totalorder %s24, 1
      %p93 = por %p91, %p92
      %p94 = scmp.ne.s32.totalorder %s86, %s89
      %p95 = scmp.eq.s32.totalorder %s24, 0
      %p96 = por %p94, %p95
      %p97 = scmp.ne.s32.totalorder %s86, %s89
      %p98 = scmp.eq.s32.totalorder %s29, 1
      %p99 = por %p97, %p98
      %p100 = scmp.ne.s32.totalorder %s89, %s90
      %p101 = scmp.eq.s32.totalorder %s29, 0
      %p102 = por %p100, %p101
      %p103 = scmp.ne.s32.totalorder %s89, %s90
      %p104 = scmp.eq.s32.totalorder %s30, 1
      %p105 = por %p103, %p104
      %p107 = scmp.ne.s32.totalorder %s90, %s106
      %p108 = scmp.eq.s32.totalorder %s30, 0
      %p109 = por %p107, %p108
      %s111 = sadd.s32 %s110, 1
      %p114 = scmp.eq.s32.totalorder %s24, 1
      %p115 = scmp.ne.s32.totalorder %s110, %s112
      %p116 = scmp.eq.s32.totalorder %s24, 0
      %p117 = por %p115, %p116
      %p118 = scmp.ne.s32.totalorder %s110, %s112
      %p119 = scmp.eq.s32.totalorder %s29, 1
      %p120 = por %p118, %p119
      %p121 = scmp.ne.s32.totalorder %s112, %s113
      %p122 = scmp.eq.s32.totalorder %s29, 0
      %p123 = por %p121, %p122
      %p124 = scmp.ne.s32.totalorder %s112, %s113
      %p125 = scmp.eq.s32.totalorder %s30, 1
      %p126 = por %p124, %p125
      %p128 = scmp.ne.s32.totalorder %s113, %s127
      %p129 = scmp.eq.s32.totalorder %s30, 0
      %p130 = por %p128, %p129
      %s132 = sadd.s32 %s131, 1
      %p135 = scmp.eq.s32.totalorder %s24, 1
      %p136 = scmp.ne.s32.totalorder %s131, %s133
      %p137 = scmp.eq.s32.totalorder %s24, 0
      %p138 = por %p136, %p137
      %p139 = scmp.ne.s32.totalorder %s131, %s133
      %p140 = scmp.eq.s32.totalorder %s29, 1
      %p141 = por %p139, %p140
      %p142 = scmp.ne.s32.totalorder %s133, %s134
      %p143 = scmp.eq.s32.totalorder %s29, 0
      %p144 = por %p142, %p143
      %p145 = scmp.ne.s32.totalorder %s133, %s134
      %p146 = scmp.eq.s32.totalorder %s30, 1
      %p147 = por %p145, %p146
      %p149 = scmp.ne.s32.totalorder %s134, %s148
      %p150 = scmp.eq.s32.totalorder %s30, 0
      %p151 = por %p149, %p150
      %s153 = sadd.s32 %s152, 1
      %p156 = scmp.eq.s32.totalorder %s24, 1
      %p157 = scmp.ne.s32.totalorder %s152, %s154
      %p158 = scmp.eq.s32.totalorder %s24, 0
      %p159 = por %p157, %p158
      %p160 = scmp.ne.s32.totalorder %s152, %s154
      %p161 = scmp.eq.s32.totalorder %s29, 1
      %p162 = por %p160, %p161
      %p163 = scmp.ne.s32.totalorder %s154, %s155
      %p164 = scmp.eq.s32.totalorder %s29, 0
      %p165 = por %p163, %p164
      %p166 = scmp.ne.s32.totalorder %s154, %s155
      %p167 = scmp.eq.s32.totalorder %s30, 1
      %p168 = por %p166, %p167
      %p170 = scmp.ne.s32.totalorder %s155, %s169
      %p171 = scmp.eq.s32.totalorder %s30, 0
      %p172 = por %p170, %p171
      %s174 = sadd.s32 %s173, 1
      %p177 = scmp.eq.s32.totalorder %s24, 1
      %p178 = scmp.ne.s32.totalorder %s173, %s175
      %p179 = scmp.eq.s32.totalorder %s24, 0
      %p180 = por %p178, %p179
      %p181 = scmp.ne.s32.totalorder %s173, %s175
      %p182 = scmp.eq.s32.totalorder %s29, 1
      %p183 = por %p181, %p182
      %p184 = scmp.ne.s32.totalorder %s175, %s176
      %p185 = scmp.eq.s32.totalorder %s29, 0
      %p186 = por %p184, %p185
      %p187 = scmp.ne.s32.totalorder %s175, %s176
      %p188 = scmp.eq.s32.totalorder %s30, 1
      %p189 = por %p187, %p188
      %p191 = scmp.ne.s32.totalorder %s176, %s190
      %p192 = scmp.eq.s32.totalorder %s30, 0
      %p193 = por %p191, %p192
      %s195 = sadd.s32 %s194, 1
      %p198 = scmp.eq.s32.totalorder %s24, 1
      %p199 = scmp.ne.s32.totalorder %s194, %s196
      %p200 = scmp.eq.s32.totalorder %s24, 0
      %p201 = por %p199, %p200
      %p202 = scmp.ne.s32.totalorder %s194, %s196
      %p203 = scmp.eq.s32.totalorder %s29, 1
      %p204 = por %p202, %p203
      %p205 = scmp.ne.s32.totalorder %s196, %s197
      %p206 = scmp.eq.s32.totalorder %s29, 0
      %p207 = por %p205, %p206
      %p208 = scmp.ne.s32.totalorder %s196, %s197
      %p209 = scmp.eq.s32.totalorder %s30, 1
      %p210 = por %p208, %p209
      %p212 = scmp.ne.s32.totalorder %s197, %s211
      %p213 = scmp.eq.s32.totalorder %s30, 0
      %p214 = por %p212, %p213
      %s216 = sadd.s32 %s215, 1
      %p219 = scmp.eq.s32.totalorder %s24, 1
      %p220 = scmp.ne.s32.totalorder %s215, %s217
      %p221 = scmp.eq.s32.totalorder %s24, 0
      %p222 = por %p220, %p221
      %p223 = scmp.ne.s32.totalorder %s215, %s217
      %p224 = scmp.eq.s32.totalorder %s29, 1
      %p225 = por %p223, %p224
      %p226 = scmp.ne.s32.totalorder %s217, %s218
      %p227 = scmp.eq.s32.totalorder %s29, 0
      %p228 = por %p226, %p227
      %p229 = scmp.ne.s32.totalorder %s217, %s218
      %p230 = scmp.eq.s32.totalorder %s30, 1
      %p231 = por %p229, %p230
      %p233 = scmp.ne.s32.totalorder %s218, %s232
      %p234 = scmp.eq.s32.totalorder %s30, 0
      %p235 = por %p233, %p234
      %s236 = ssub.s32 %s24, %s31
      %p237 = scmp.eq.s32.totalorder %s236, 0
      %s239 = sadd.s32 %s238, 1
      %s240 = scalar_select %p237, %s238, %s239
      %p243 = pneg %p237
      %p244 = scmp.eq.s32.totalorder %s24, 1
      %p245 = por %p243, %p244
      %p246 = scmp.ne.s32.totalorder %s238, %s241
      %p247 = scmp.eq.s32.totalorder %s24, 0
      %p248 = por %p246, %p247
      %p249 = scmp.ne.s32.totalorder %s238, %s241
      %p250 = scmp.eq.s32.totalorder %s29, 1
      %p251 = por %p249, %p250
      %p252 = scmp.ne.s32.totalorder %s241, %s242
      %p253 = scmp.eq.s32.totalorder %s29, 0
      %p254 = por %p252, %p253
      %p255 = scmp.ne.s32.totalorder %s241, %s242
      %p256 = scmp.eq.s32.totalorder %s30, 1
      %p257 = por %p255, %p256
      %p259 = scmp.ne.s32.totalorder %s242, %s258
      %p260 = scmp.eq.s32.totalorder %s30, 0
      %p261 = por %p259, %p260
      %p262 = scmp.le.s32.totalorder 1, %s24
      %p263 = scmp.lt.s32.totalorder %s24, 3
      %p264 = pnand %p262, %p263
      %p265 = pneg %p264
      // Predicated region
      $region9: #{tpu_custom_call.1} parent=5 // pred_check
        _
      $region10: #{tpu_custom_call.1} parent=5 // pred_check_branch
        %267 = sbr.rel (%p264) target = $region12
      $region11: #{tpu_custom_call.1} parent=5 // pred_region
        %s268 = ssub.s32 %s24, 1
        // Predicated region
        $region13: #{tpu_custom_call.1} parent=11 // pred_check
          %p269 = pneg %p123
        $region14: #{tpu_custom_call.1} parent=11 // pred_check_branch
          %271 = sbr.rel (%p269) target = $region16
        $region15: #{tpu_custom_call.1} parent=11 // pred_region
          _
        $region16: #{tpu_custom_call.1} parent=11 // pred_fallthru
          _
        // Predicated region
        $region17: #{tpu_custom_call.1} parent=11 // pred_check
          %p272 = pneg %p144
        $region18: #{tpu_custom_call.1} parent=11 // pred_check_branch
          %274 = sbr.rel (%p272) target = $region20
        $region19: #{tpu_custom_call.1} parent=11 // pred_region
          _
        $region20: #{tpu_custom_call.1} parent=11 // pred_fallthru
          _
        // Predicated region
        $region21: #{tpu_custom_call.1} parent=11 // pred_check
          %p275 = pneg %p165
        $region22: #{tpu_custom_call.1} parent=11 // pred_check_branch
          %277 = sbr.rel (%p275) target = $region24
        $region23: #{tpu_custom_call.1} parent=11 // pred_region
          _
        $region24: #{tpu_custom_call.1} parent=11 // pred_fallthru
          _
        // Predicated region
        $region25: #{tpu_custom_call.1} parent=11 // pred_check
          %p278 = pneg %p186
        $region26: #{tpu_custom_call.1} parent=11 // pred_check_branch
          %280 = sbr.rel (%p278) target = $region28
        $region27: #{tpu_custom_call.1} parent=11 // pred_region
          _
        $region28: #{tpu_custom_call.1} parent=11 // pred_fallthru
          _
        // Predicated region
        $region29: #{tpu_custom_call.1} parent=11 // pred_check
          %p281 = pneg %p207
        $region30: #{tpu_custom_call.1} parent=11 // pred_check_branch
          %283 = sbr.rel (%p281) target = $region32
        $region31: #{tpu_custom_call.1} parent=11 // pred_region
          _
        $region32: #{tpu_custom_call.1} parent=11 // pred_fallthru
          _
        // Predicated region
        $region33: #{tpu_custom_call.1} parent=11 // pred_check
          %p284 = pneg %p228
        $region34: #{tpu_custom_call.1} parent=11 // pred_check_branch
          %286 = sbr.rel (%p284) target = $region36
        $region35: #{tpu_custom_call.1} parent=11 // pred_region
          _
        $region36: #{tpu_custom_call.1} parent=11 // pred_fallthru
          _
      $region12: #{tpu_custom_call.1} parent=5 // pred_fallthru
        _
      %p287 = scmp.lt.s32.totalorder %s24, 2
      // Predicated region
      $region37: #{tpu_custom_call.1} parent=5 // pred_check
        %p288 = pneg %p287
      $region38: #{tpu_custom_call.1} parent=5 // pred_check_branch
        %290 = sbr.rel (%p288) target = $region40
      $region39: #{tpu_custom_call.1} parent=5 // pred_region
        // Predicated region
        $region41: #{tpu_custom_call.1} parent=39 // pred_check
          %p291 = pneg %p44
        $region42: #{tpu_custom_call.1} parent=39 // pred_check_branch
          %293 = sbr.rel (%p291) target = $region44
        $region43: #{tpu_custom_call.1} parent=39 // pred_region
          %s294 = sand.u32 %s34, 1
          %s295 = scalar_lea.sflag [#allocation4], %s294
          %s296 = sand.u32 %s34, 1
          %s297 = smul.addr %s296, 32
          %s298 = scalar_lea.vmem [#allocation3], %s297
          %s299 = smul.u32 2, %s24
          %301 = vsyncadd %s295, 0
          %s302 = smul.addr %s299, 8
          %s303 = scalar_lea.hbm %s0, %s302
          %s304 = sshll.u32 %s303, 4
          %s305 = int_to_ptr.hbm [resolvable:$true] %s304
          %s306 = sshll.u32 %s298, 4
          %s307 = int_to_ptr.vmem [resolvable:$true] %s306
          %312 = dma.hbm_to_vmem [thread:$0]  %s305, 512, %s307, %s295, 512, 256, 16
        $region44: #{tpu_custom_call.1} parent=39 // pred_fallthru
          _
        // Predicated region
        $region45: #{tpu_custom_call.1} parent=39 // pred_check
          %p313 = pneg %p70
        $region46: #{tpu_custom_call.1} parent=39 // pred_check_branch
          %315 = sbr.rel (%p313) target = $region48
        $region47: #{tpu_custom_call.1} parent=39 // pred_region
          %s316 = sand.u32 %s24, 1
          %s317 = scalar_lea.sflag [#allocation7], %s316
          %s318 = sand.u32 %s60, 1
          %s319 = smul.addr %s318, 80
          %s320 = scalar_lea.vmem [#allocation6], %s319
          %s321 = smul.u32 2, %s24
          %323 = vsyncadd %s317, 0
          %s324 = smul.addr %s321, 8
          %s325 = scalar_lea.hbm %s1, %s324
          %s326 = sshll.u32 %s325, 4
          %s327 = int_to_ptr.hbm [resolvable:$true] %s326
          %s328 = sshll.u32 %s320, 4
          %s329 = int_to_ptr.vmem [resolvable:$true] %s328
          %334 = dma.hbm_to_vmem [thread:$0]  %s327, 1280, %s329, %s317, 512, 256, 16
        $region48: #{tpu_custom_call.1} parent=39 // pred_fallthru
          _
        // Predicated region
        $region49: #{tpu_custom_call.1} parent=39 // pred_check
          %p335 = pneg %p96
        $region50: #{tpu_custom_call.1} parent=39 // pred_check_branch
          %337 = sbr.rel (%p335) target = $region52
        $region51: #{tpu_custom_call.1} parent=39 // pred_region
          %s338 = sand.u32 %s24, 1
          %s339 = scalar_lea.sflag [#allocation7], %s338
          %s340 = sand.u32 %s86, 1
          %s341 = smul.addr %s340, 16
          %s342 = scalar_lea.vmem [#allocation8], %s341
          %s343 = smul.u32 2, %s24
          %345 = vsyncadd %s339, 0
          %s346 = smul.addr %s343, 8
          %s347 = scalar_lea.hbm %s2, %s346
          %s349 = sshll.u32 %s347, 4
          %s350 = int_to_ptr.hbm [resolvable:$true] %s349
          %s351 = sshll.u32 %s342, 4
          %s352 = int_to_ptr.vmem [resolvable:$true] %s351
          %354 = dma.hbm_to_vmem [thread:$0]  %s350, 256, %s352, %s339
        $region52: #{tpu_custom_call.1} parent=39 // pred_fallthru
          _
      $region40: #{tpu_custom_call.1} parent=5 // pred_fallthru
        _
      %p355 = scmp.le.s32.totalorder 1, %s24
      %p356 = scmp.lt.s32.totalorder %s24, 3
      %p357 = pnand %p355, %p356
      %p358 = pneg %p357
      // Predicated region
      $region53: #{tpu_custom_call.1} parent=5 // pred_check
        _
      $region54: #{tpu_custom_call.1} parent=5 // pred_check_branch
        %360 = sbr.rel (%p357) target = $region56
      $region55: #{tpu_custom_call.1} parent=5 // pred_region
        %s361 = ssub.s32 %s24, 1
        %s362 = sand.u32 %s37, 1
        %s363 = scalar_lea.sflag [#allocation4], %s362
        %s364 = sand.u32 %s37, 1
        %s365 = smul.addr %s364, 32
        %s366 = scalar_lea.vmem [#allocation3], %s365
        // Predicated region
        $region57: #{tpu_custom_call.1} parent=55 // pred_check
          %p367 = pneg %p50
        $region58: #{tpu_custom_call.1} parent=55 // pred_check_branch
          %369 = sbr.rel (%p367) target = $region60
        $region59: #{tpu_custom_call.1} parent=55 // pred_region
          %371 = dma.done %s363, 512
        $region60: #{tpu_custom_call.1} parent=55 // pred_fallthru
          _
        %s372 = sand.u32 %s29, 1
        %s373 = scalar_lea.sflag [#allocation7], %s372
        %s374 = sand.u32 %s63, 1
        %s375 = smul.addr %s374, 80
        %s376 = scalar_lea.vmem [#allocation6], %s375
        // Predicated region
        $region61: #{tpu_custom_call.1} parent=55 // pred_check
          %p377 = pneg %p76
        $region62: #{tpu_custom_call.1} parent=55 // pred_check_branch
          %379 = sbr.rel (%p377) target = $region64
        $region63: #{tpu_custom_call.1} parent=55 // pred_region
          %381 = dma.done %s373, 1280
        $region64: #{tpu_custom_call.1} parent=55 // pred_fallthru
          _
        %s382 = sand.u32 %s29, 1
        %s383 = scalar_lea.sflag [#allocation7], %s382
        %s384 = sand.u32 %s89, 1
        %s385 = smul.addr %s384, 16
        %s386 = scalar_lea.vmem [#allocation8], %s385
        // Predicated region
        $region65: #{tpu_custom_call.1} parent=55 // pred_check
          %p387 = pneg %p102
        $region66: #{tpu_custom_call.1} parent=55 // pred_check_branch
          %389 = sbr.rel (%p387) target = $region68
        $region67: #{tpu_custom_call.1} parent=55 // pred_region
          %391 = dma.done %s383, 256
        $region68: #{tpu_custom_call.1} parent=55 // pred_fallthru
          _
        %s392 = sand.u32 %s37, 1
        %s393 = scalar_lea.sflag [#allocation4], %s392
        %s394 = sand.u32 %s37, 1
        %s395 = smul.addr %s394, 32
        %s396 = scalar_lea.vmem [#allocation3], %s395
        %p397 = pneg %p50
        %p398 = pneg %p47
        %s399 = sand.u32 %s29, 1
        %s400 = scalar_lea.sflag [#allocation7], %s399
        %s401 = sand.u32 %s63, 1
        %s402 = smul.addr %s401, 80
        %s403 = scalar_lea.vmem [#allocation6], %s402
        %p404 = pneg %p76
        %p405 = pneg %p73
        %s406 = sand.u32 %s29, 1
        %s407 = scalar_lea.sflag [#allocation7], %s406
        %s408 = sand.u32 %s89, 1
        %s409 = smul.addr %s408, 16
        %s410 = scalar_lea.vmem [#allocation8], %s409
        %p411 = pneg %p102
        %p412 = pneg %p99
        %p413 = pneg %p123
        %p414 = pneg %p120
        %p415 = pneg %p144
        %p416 = pneg %p141
        %p417 = pneg %p165
        %p418 = pneg %p162
        %p419 = pneg %p186
        %p420 = pneg %p183
        %p421 = pneg %p207
        %p422 = pneg %p204
        %p423 = pneg %p228
        %p424 = pneg %p225
        %p425 = pneg %p254
        %p426 = pneg %p251
        %s427 = sand.u32 %s241, 1
        %s428 = scalar_lea.sflag [#allocation5], %s427
        %s429 = sand.u32 %s241, 1
        %s430 = smul.addr %s429, 16
        %s431 = scalar_lea.vmem [#allocation9], %s430
        %s432 = smul.u32 2, %s29
        %s433 = smul.u32 2, %s29
        %s434 = smul.u32 2, %s29
        %s435 = smul.u32 2, %s29
        %v436 = vld [vmem:[%s3] sm:$0x7]
        %v437 = vld [vmem:[%s366] sm:$0xff]
        %v438 = vld [vmem:[%s366 + $0x8] sm:$0xff]
        %v439 = vld [vmem:[%s366 + $0x10] sm:$0xf]
        %v440 = vld [vmem:[%s366 + $0x18] sm:$0xf]
        %v441 = vld [vmem:[%s4] sm:$0xff]
        %v442 = vld [vmem:[%s376] sm:$0xff]
        %v443 = vld [vmem:[%s376 + $0x8] sm:$0xff]
        %v444 = vld [vmem:[%s376 + $0x10] sm:$0xff]
        %v445 = vld [vmem:[%s376 + $0x18] sm:$0xff]
        %v446 = vld [vmem:[%s376 + $0x20] sm:$0xff]
        %v447 = vld [vmem:[%s376 + $0x28] sm:$0xff]
        %v448 = vld [vmem:[%s376 + $0x30] sm:$0xff]
        %v449 = vld [vmem:[%s376 + $0x38] sm:$0xff]
        %v450 = vld [vmem:[%s376 + $0x40] sm:$0xff]
        %v451 = vld [vmem:[%s376 + $0x48] sm:$0xff]
        %vm452 = vcmask 326656
        %v454 = vsel %vm452, %v441, 0
        %456 = vmatpush.msra.mxu0 0.0
        %457 = vmatpush.msra.mxu0 0.0
        %458 = vmatpush.msra.mxu0 0.0
        %459 = vmatpush.msra.mxu0 0.0
        %460 = vmatpush.msra.mxu0 0.0
        %461 = vmatpush.msra.mxu0 0.0
        %462 = vmatpush.msra.mxu0 0.0
        %463 = vmatpush.msra.mxu0 0.0
        %464 = vmatpush.msra.mxu0 0.0
        %465 = vmatpush.msra.mxu0 0.0
        %466 = vmatpush.msra.mxu0 0.0
        %467 = vmatpush.msra.mxu0 %v450
        %468 = vmatpush.msra.mxu0 %v448
        %469 = vmatpush.msra.mxu0 %v446
        %470 = vmatpush.msra.mxu0 %v444
        %471 = vmatpush.msra.mxu0 %v442
        %472 = vmatmul.f32.gmra.mxu0 %v454
        %v473 = vpop.f32.mrf.mxu0
        %v474 = vadd.f32 0.0, %v473
        %475 = vdwg.mxu0
        %476 = vmatpush.msra.mxu0 0.0
        %477 = vmatpush.msra.mxu0 0.0
        %478 = vmatpush.msra.mxu0 0.0
        %479 = vmatpush.msra.mxu0 0.0
        %480 = vmatpush.msra.mxu0 0.0
        %481 = vmatpush.msra.mxu0 0.0
        %482 = vmatpush.msra.mxu0 0.0
        %483 = vmatpush.msra.mxu0 0.0
        %484 = vmatpush.msra.mxu0 0.0
        %485 = vmatpush.msra.mxu0 0.0
        %486 = vmatpush.msra.mxu0 0.0
        %487 = vmatpush.msra.mxu0 %v451
        %488 = vmatpush.msra.mxu0 %v449
        %489 = vmatpush.msra.mxu0 %v447
        %490 = vmatpush.msra.mxu0 %v445
        %491 = vmatpush.msra.mxu0 %v443
        %492 = vmatmul.f32.gmra.mxu0 %v454
        %v493 = vpop.f32.mrf.mxu0
        %v494 = vadd.f32 0.0, %v493
        %495 = vdwg.mxu0
        %v496 = vld [vmem:[%s386] sm:$0xff]
        %v497 = vld [vmem:[%s386 + $0x8] sm:$0xff]
        %vm498 = vcmp.gt.f32.partialorder %v496, 0.0
        %vm499 = vcmp.gt.f32.partialorder %v497, 0.0
        %v500 = vsel %vm498, %v474, -1.7014117e+38
        %v501 = vsel %vm499, %v494, -1.7014117e+38
        %v502 = vld [vmem:[%s8] sm:$0xff]
        %504 = vset.pattern.permute.xlu0 0
        %505 = vperm.xlu0 %504, %v502
        %v506 = vpop.permute.xlu0 %505
        %v508 = vmul.f32 %v500, %v506
        %v509 = vmul.f32 %v501, %v506
        %v510 = vld [vmem:[%s5] sm:$0xff]
        %vm511 = vcmp.gt.f32.partialorder %v510, 0.0
        %v512 = vsel %vm511, 1, 0
        %513 = vset.pattern.permute.xlu0 0
        %514 = vperm.xlu0 %513, %v512
        %v515 = vpop.permute.xlu0 %514
        %vm516 = vcmp.eq.s32.totalorder %v515, 1
        %v517 = vsel %vm516, %v508, -inf
        %v518 = vsel %vm516, %v509, -inf
        %v519 = vrot.slane %v517, 4
        %v520 = vmax.f32 %v517, %v519
        %v521 = vrot.slane %v520, 2
        %v522 = vmax.f32 %v520, %v521
        %v523 = vrot.slane %v522, 1
        %v524 = vmax.f32 %v522, %v523
        %v525 = vrot.slane %v518, 4
        %v526 = vmax.f32 %v518, %v525
        %v527 = vrot.slane %v526, 2
        %v528 = vmax.f32 %v526, %v527
        %v529 = vrot.slane %v528, 1
        %v530 = vmax.f32 %v528, %v529
        %v533 = vrot.slane %v530, 7
        %vm534 = vcmask 1040384
        %v535 = vsel %vm534, %v524, %v533
        %v537 = vlaneseq
        %vm538 = vcmp.ge.s32.totalorder %v537, 0
        %vm539 = vcmp.lt.s32.totalorder %v537, 256
        %vm540 = vmand %vm538, %vm539
        %541 = vst.msk [vmem:[#allocation2] ss:$4 sm:$0x3] %vm540, %v535
        %542 = vset.pattern.permute.xlu0 1
        %543 = vperm.xlu0 %542, %v512
        %v544 = vpop.permute.xlu0 %543
        %vm545 = vcmp.eq.s32.totalorder %v544, 1
        %v546 = vsel %vm545, %v508, -inf
        %v547 = vsel %vm545, %v509, -inf
        %v548 = vrot.slane %v546, 4
        %v549 = vmax.f32 %v546, %v548
        %v550 = vrot.slane %v549, 2
        %v551 = vmax.f32 %v549, %v550
        %v552 = vrot.slane %v551, 1
        %v553 = vmax.f32 %v551, %v552
        %v554 = vrot.slane %v547, 4
        %v555 = vmax.f32 %v547, %v554
        %v556 = vrot.slane %v555, 2
        %v557 = vmax.f32 %v555, %v556
        %v558 = vrot.slane %v557, 1
        %v559 = vmax.f32 %v557, %v558
        %v562 = vrot.slane %v559, 7
        %v563 = vsel %vm534, %v553, %v562
        %s565 = scalar_lea.vmem [#allocation2], 1
        %566 = vst.msk [vmem:[%s565] ss:$4 sm:$0x3] %vm540, %v563
        %567 = vset.pattern.permute.xlu0 2
        %568 = vperm.xlu0 %567, %v512
        %v569 = vpop.permute.xlu0 %568
        %vm570 = vcmp.eq.s32.totalorder %v569, 1
        %v571 = vsel %vm570, %v508, -inf
        %v572 = vsel %vm570, %v509, -inf
        %v573 = vrot.slane %v571, 4
        %v574 = vmax.f32 %v571, %v573
        %v575 = vrot.slane %v574, 2
        %v576 = vmax.f32 %v574, %v575
        %v577 = vrot.slane %v576, 1
        %v578 = vmax.f32 %v576, %v577
        %v579 = vrot.slane %v572, 4
        %v580 = vmax.f32 %v572, %v579
        %v581 = vrot.slane %v580, 2
        %v582 = vmax.f32 %v580, %v581
        %v583 = vrot.slane %v582, 1
        %v584 = vmax.f32 %v582, %v583
        %v587 = vrot.slane %v584, 7
        %v588 = vsel %vm534, %v578, %v587
        %s590 = scalar_lea.vmem [#allocation2], 2
        %591 = vst.msk [vmem:[%s590] ss:$4 sm:$0x3] %vm540, %v588
        %v592 = vld [vmem:[#allocation2] sm:$0x77]
        %594 = vst [vmem:[#allocation1] ss:$2 sm:$0xff] %v592
        %v595 = vld.sshfl [vmem:[#allocation1] sm:$0xff pattern:$0x75316420]
        %v596 = vld.sshfl [vmem:[#allocation1 + $0x8] sm:$0xff pattern:$0x75316420]
        %vm597 = vcmask 23552
        %v599 = vsel %vm597, %v510, 0
        %vm601 = vcmask 1042432
        %v602 = vsel %vm601, %v595, 0
        %v604 = vsel %vm601, %v596, 0
        %606 = vmatpush.msra.mxu0 0.0
        %607 = vmatpush.msra.mxu0 0.0
        %608 = vmatpush.msra.mxu0 0.0
        %609 = vmatpush.msra.mxu0 0.0
        %610 = vmatpush.msra.mxu0 0.0
        %611 = vmatpush.msra.mxu0 0.0
        %612 = vmatpush.msra.mxu0 0.0
        %613 = vmatpush.msra.mxu0 0.0
        %614 = vmatpush.msra.mxu0 0.0
        %615 = vmatpush.msra.mxu0 0.0
        %616 = vmatpush.msra.mxu0 0.0
        %617 = vmatpush.msra.mxu0 0.0
        %618 = vmatpush.msra.mxu0 0.0
        %619 = vmatpush.msra.mxu0 0.0
        %620 = vmatpush.msra.mxu0 0.0
        %621 = vmatpush.msra.mxu0 %v602
        %622 = vmatmul.f32.gmra.mxu0 %v599
        %v623 = vpop.f32.mrf.mxu0
        %v624 = vadd.f32 0.0, %v623
        %625 = vdwg.mxu0
        %626 = vmatpush.msra.mxu0 0.0
        %627 = vmatpush.msra.mxu0 0.0
        %628 = vmatpush.msra.mxu0 0.0
        %629 = vmatpush.msra.mxu0 0.0
        %630 = vmatpush.msra.mxu0 0.0
        %631 = vmatpush.msra.mxu0 0.0
        %632 = vmatpush.msra.mxu0 0.0
        %633 = vmatpush.msra.mxu0 0.0
        %634 = vmatpush.msra.mxu0 0.0
        %635 = vmatpush.msra.mxu0 0.0
        %636 = vmatpush.msra.mxu0 0.0
        %637 = vmatpush.msra.mxu0 0.0
        %638 = vmatpush.msra.mxu0 0.0
        %639 = vmatpush.msra.mxu0 0.0
        %640 = vmatpush.msra.mxu0 0.0
        %641 = vmatpush.msra.mxu0 %v604
        %642 = vmatmul.f32.gmra.mxu0 %v599
        %v643 = vpop.f32.mrf.mxu0
        %v644 = vadd.f32 0.0, %v643
        %645 = vdwg.mxu0
        %v646 = vsub.f32 %v508, %v624
        %v647 = vsub.f32 %v509, %v644
        %v648 = vmul.f32 %v646, 1.442695
        %v649 = vpow.pop %v648
        %v650 = vmul.f32 %v647, 1.442695
        %v651 = vpow.pop %v650
        %v652 = vld [vmem:[%s6] sm:$0x7]
        %vm653 = vcmask 64512
        %v655 = vsel %vm653, %v652, 0
        %657 = vmatpush.msra.mxu0 0.0
        %658 = vmatpush.msra.mxu0 0.0
        %659 = vmatpush.msra.mxu0 0.0
        %660 = vmatpush.msra.mxu0 0.0
        %661 = vmatpush.msra.mxu0 0.0
        %662 = vmatpush.msra.mxu0 0.0
        %663 = vmatpush.msra.mxu0 0.0
        %664 = vmatpush.msra.mxu0 0.0
        %665 = vmatpush.msra.mxu0 0.0
        %666 = vmatpush.msra.mxu0 0.0
        %667 = vmatpush.msra.mxu0 0.0
        %668 = vmatpush.msra.mxu0 0.0
        %669 = vmatpush.msra.mxu0 0.0
        %670 = vmatpush.msra.mxu0 0.0
        %671 = vmatpush.msra.mxu0 0.0
        %672 = vmatpush.msra.mxu0 %v649
        %673 = vmatmul.f32.gmra.mxu0 %v655
        %v674 = vpop.f32.mrf.mxu0
        %v675 = vadd.f32 0.0, %v674
        %676 = vdwg.mxu0
        %677 = vmatpush.msra.mxu0 0.0
        %678 = vmatpush.msra.mxu0 0.0
        %679 = vmatpush.msra.mxu0 0.0
        %680 = vmatpush.msra.mxu0 0.0
        %681 = vmatpush.msra.mxu0 0.0
        %682 = vmatpush.msra.mxu0 0.0
        %683 = vmatpush.msra.mxu0 0.0
        %684 = vmatpush.msra.mxu0 0.0
        %685 = vmatpush.msra.mxu0 0.0
        %686 = vmatpush.msra.mxu0 0.0
        %687 = vmatpush.msra.mxu0 0.0
        %688 = vmatpush.msra.mxu0 0.0
        %689 = vmatpush.msra.mxu0 0.0
        %690 = vmatpush.msra.mxu0 0.0
        %691 = vmatpush.msra.mxu0 0.0
        %692 = vmatpush.msra.mxu0 %v651
        %693 = vmatmul.f32.gmra.mxu0 %v655
        %v694 = vpop.f32.mrf.mxu0
        %v695 = vadd.f32 0.0, %v694
        %696 = vdwg.mxu0
        %v697 = vlog2.pop %v675
        %v698 = vmul.f32 %v697, 0.6931472
        %v699 = vlog2.pop %v695
        %v700 = vmul.f32 %v699, 0.6931472
        %701 = vst [vmem:[#allocation1] ss:$2 sm:$0xff] %v592
        %v702 = vld.sshfl [vmem:[#allocation1] sm:$0xff pattern:$0x75316420]
        %v703 = vld.sshfl [vmem:[#allocation1 + $0x8] sm:$0xff pattern:$0x75316420]
        %v706 = vadd.f32 %v698, %v702
        %v707 = vadd.f32 %v700, %v703
        %v708 = vld [vmem:[%s7] sm:$0x7]
        %710 = vset.pattern.permute.xlu0 0
        %711 = vperm.xlu0 %710, %v708
        %v712 = vpop.permute.xlu0 %711
        %v714 = vmul.f32 %v712, %v706
        %v715 = vmul.f32 %v712, %v707
        %vm716 = vcmask 97280
        %v718 = vsel %vm716, %v436, 0
        %vm720 = vcmask 1043456
        %v722 = vsel %vm720, %v439, 0
        %v725 = vsel %vm720, %v440, 0
        %727 = vmatpush.msra.mxu0 0.0
        %728 = vmatpush.msra.mxu0 0.0
        %729 = vmatpush.msra.mxu0 0.0
        %730 = vmatpush.msra.mxu0 0.0
        %731 = vmatpush.msra.mxu0 0.0
        %732 = vmatpush.msra.mxu0 0.0
        %733 = vmatpush.msra.mxu0 0.0
        %734 = vmatpush.msra.mxu0 0.0
        %735 = vmatpush.msra.mxu0 0.0
        %736 = vmatpush.msra.mxu0 0.0
        %737 = vmatpush.msra.mxu0 0.0
        %738 = vmatpush.msra.mxu0 0.0
        %739 = vmatpush.msra.mxu0 0.0
        %740 = vmatpush.msra.mxu0 0.0
        %741 = vmatpush.msra.mxu0 %v722
        %742 = vmatpush.msra.mxu0 %v437
        %743 = vmatmul.f32.gmra.mxu0 %v718
        %v744 = vpop.f32.mrf.mxu0
        %v745 = vadd.f32 %v714, %v744
        %746 = vdwg.mxu0
        %747 = vmatpush.msra.mxu0 0.0
        %748 = vmatpush.msra.mxu0 0.0
        %749 = vmatpush.msra.mxu0 0.0
        %750 = vmatpush.msra.mxu0 0.0
        %751 = vmatpush.msra.mxu0 0.0
        %752 = vmatpush.msra.mxu0 0.0
        %753 = vmatpush.msra.mxu0 0.0
        %754 = vmatpush.msra.mxu0 0.0
        %755 = vmatpush.msra.mxu0 0.0
        %756 = vmatpush.msra.mxu0 0.0
        %757 = vmatpush.msra.mxu0 0.0
        %758 = vmatpush.msra.mxu0 0.0
        %759 = vmatpush.msra.mxu0 0.0
        %760 = vmatpush.msra.mxu0 0.0
        %761 = vmatpush.msra.mxu0 %v725
        %762 = vmatpush.msra.mxu0 %v438
        %763 = vmatmul.f32.gmra.mxu0 %v718
        %v764 = vpop.f32.mrf.mxu0
        %v765 = vadd.f32 %v715, %v764
        %766 = vdwg.mxu0
        %v767 = vsel %vm601, %v745, -inf
        %v768 = vrot.slane %v767, 4
        %v769 = vmax.f32 %v767, %v768
        %v770 = vrot.slane %v769, 2
        %v771 = vmax.f32 %v769, %v770
        %v772 = vrot.slane %v771, 1
        %v773 = vmax.f32 %v771, %v772
        %v774 = vsel %vm601, %v765, -inf
        %v775 = vrot.slane %v774, 4
        %v776 = vmax.f32 %v774, %v775
        %v777 = vrot.slane %v776, 2
        %v778 = vmax.f32 %v776, %v777
        %v779 = vrot.slane %v778, 1
        %v780 = vmax.f32 %v778, %v779
        %v781 = vsub.f32 %v745, %v773
        %v782 = vsub.f32 %v765, %v780
        %v783 = vmul.f32 %v781, 1.442695
        %v784 = vpow.pop %v783
        %v785 = vmul.f32 %v782, 1.442695
        %v786 = vpow.pop %v785
        %v787 = vsel %vm601, %v784, 0.0
        %v788 = vrot.slane %v787, 4
        %v789 = vadd.f32 %v787, %v788
        %v790 = vrot.slane %v789, 2
        %v791 = vadd.f32 %v789, %v790
        %v792 = vrot.slane %v791, 1
        %v793 = vadd.f32 %v791, %v792
        %v794 = vsel %vm601, %v786, 0.0
        %v795 = vrot.slane %v794, 4
        %v796 = vadd.f32 %v794, %v795
        %v797 = vrot.slane %v796, 2
        %v798 = vadd.f32 %v796, %v797
        %v799 = vrot.slane %v798, 1
        %v800 = vadd.f32 %v798, %v799
        %v801 = vlog2.pop %v793
        %v802 = vmul.f32 %v801, 0.6931472
        %v803 = vlog2.pop %v800
        %v804 = vmul.f32 %v803, 0.6931472
        %v805 = vadd.f32 %v802, %v773
        %v806 = vadd.f32 %v804, %v780
        %v807 = vsub.f32 %v745, %v706
        %v808 = vsub.f32 %v765, %v707
        %v810 = vsel %vm601, %v807, 0
        %v813 = vsel %vm601, %v808, 0
        %815 = vmatpush.msra.mxu0 0.0
        %816 = vmatpush.msra.mxu0 0.0
        %817 = vmatpush.msra.mxu0 0.0
        %818 = vmatpush.msra.mxu0 0.0
        %819 = vmatpush.msra.mxu0 0.0
        %820 = vmatpush.msra.mxu0 0.0
        %821 = vmatpush.msra.mxu0 0.0
        %822 = vmatpush.msra.mxu0 0.0
        %823 = vmatpush.msra.mxu0 0.0
        %824 = vmatpush.msra.mxu0 0.0
        %825 = vmatpush.msra.mxu0 0.0
        %826 = vmatpush.msra.mxu0 0.0
        %827 = vmatpush.msra.mxu0 0.0
        %828 = vmatpush.msra.mxu0 0.0
        %829 = vmatpush.msra.mxu0 0.0
        %830 = vmatpush.msra.mxu0 %v810
        %831 = vmatmul.f32.gmra.mxu0 %v599
        %v832 = vpop.f32.mrf.mxu0
        %v833 = vadd.f32 0.0, %v832
        %834 = vdwg.mxu0
        %835 = vmatpush.msra.mxu0 0.0
        %836 = vmatpush.msra.mxu0 0.0
        %837 = vmatpush.msra.mxu0 0.0
        %838 = vmatpush.msra.mxu0 0.0
        %839 = vmatpush.msra.mxu0 0.0
        %840 = vmatpush.msra.mxu0 0.0
        %841 = vmatpush.msra.mxu0 0.0
        %842 = vmatpush.msra.mxu0 0.0
        %843 = vmatpush.msra.mxu0 0.0
        %844 = vmatpush.msra.mxu0 0.0
        %845 = vmatpush.msra.mxu0 0.0
        %846 = vmatpush.msra.mxu0 0.0
        %847 = vmatpush.msra.mxu0 0.0
        %848 = vmatpush.msra.mxu0 0.0
        %849 = vmatpush.msra.mxu0 0.0
        %850 = vmatpush.msra.mxu0 %v813
        %851 = vmatmul.f32.gmra.mxu0 %v599
        %v852 = vpop.f32.mrf.mxu0
        %v853 = vadd.f32 0.0, %v852
        %854 = vdwg.mxu0
        %v855 = vadd.f32 %v508, %v833
        %v856 = vadd.f32 %v509, %v853
        %v857 = vsub.f32 %v855, %v805
        %v858 = vsub.f32 %v856, %v806
        %859 = vst [vmem:[%s431] sm:$0xff] %v857
        %860 = vst [vmem:[%s431 + $0x8] sm:$0xff] %v858
        %s861 = sand.u32 %s241, 1
        %s862 = scalar_lea.sflag [#allocation5], %s861
        %s863 = sand.u32 %s241, 1
        %s864 = smul.addr %s863, 16
        %s865 = scalar_lea.vmem [#allocation9], %s864
        // Predicated region
        $region69: #{tpu_custom_call.1} parent=55 // pred_check
          %p866 = pneg %p251
        $region70: #{tpu_custom_call.1} parent=55 // pred_check_branch
          %868 = sbr.rel (%p866) target = $region72
        $region71: #{tpu_custom_call.1} parent=55 // pred_region
          %s869 = smul.u32 2, %s29
          %871 = vsyncadd %s862, 0
          %s872 = smul.addr %s869, 8
          %s873 = scalar_lea.hbm %s9, %s872
          %s875 = sshll.u32 %s865, 4
          %s876 = int_to_ptr.vmem [resolvable:$true] %s875
          %s877 = sshll.u32 %s873, 4
          %s878 = int_to_ptr.hbm [resolvable:$true] %s877
          %880 = dma.vmem_to_hbm [thread:$0]  %s876, 256, %s878, %s862
        $region72: #{tpu_custom_call.1} parent=55 // pred_fallthru
          _
      $region56: #{tpu_custom_call.1} parent=5 // pred_fallthru
        _
      %p881 = scmp.le.s32.totalorder 2, %s24
      // Predicated region
      $region73: #{tpu_custom_call.1} parent=5 // pred_check
        %p882 = pneg %p881
      $region74: #{tpu_custom_call.1} parent=5 // pred_check_branch
        %884 = sbr.rel (%p882) target = $region76
      $region75: #{tpu_custom_call.1} parent=5 // pred_region
        %s885 = ssub.s32 %s24, 2
        // Predicated region
        $region77: #{tpu_custom_call.1} parent=75 // pred_check
          %p886 = pneg %p257
        $region78: #{tpu_custom_call.1} parent=75 // pred_check_branch
          %888 = sbr.rel (%p886) target = $region80
        $region79: #{tpu_custom_call.1} parent=75 // pred_region
          %s889 = sand.u32 %s242, 1
          %s890 = scalar_lea.sflag [#allocation5], %s889
          %s891 = sand.u32 %s242, 1
          %s892 = smul.addr %s891, 16
          %s893 = scalar_lea.vmem [#allocation9], %s892
          %895 = dma.done %s890, 256
        $region80: #{tpu_custom_call.1} parent=75 // pred_fallthru
          _
      $region76: #{tpu_custom_call.1} parent=5 // pred_fallthru
        _
    $region6: #{tpu_custom_call.1} parent=1 // loop_footer
      %s28 = sadd.s32 1, %s24
    $region7: #{tpu_custom_call.1} parent=1 // loop_footer_branch
      %23 = sbr.rel target = $region3
    $region8: #{tpu_custom_call.1} parent=1 // loop_exit
      _
    %896 = vsyncpa [#allocation4], 1
    %s897 = scalar_lea.sflag [#allocation4], 1
    %898 = vsyncpa %s897, 1
    %899 = vsyncpa [#allocation7], 1
    %s900 = scalar_lea.sflag [#allocation7], 1
    %901 = vsyncpa %s900, 1
    %902 = vsyncpa [#allocation5], 1
    %s903 = scalar_lea.sflag [#allocation5], 1
    %904 = vsyncpa %s903, 1

</llo_original>
